<compile_context>
chip_gen: v6e
topology: v6e:2x2x1
jax: 0.10.0
libtpu: 0.0.40
codegen_flags: <defaults>
</compile_context>

<pallas_src>
from functools import partial

import jax
import jax.numpy as jnp
from jax.experimental import pallas as pl
from jax.experimental.pallas import tpu as pltpu


def _uncertainty_kernel(sigma_ref, losses_ref, weight_ref, total_ref):
    sigma = sigma_ref[...]                 # (1, T) f32
    task_losses = losses_ref[...]          # (1, T) f32

    sig2 = sigma * sigma
    weight = 1.0 / (2.0 * sig2)            # exact reciprocal (launch-bound op)
    per_task = weight * task_losses + jnp.log1p(sig2)

    weight_ref[...] = weight
    total_ref[...] = jnp.sum(per_task, axis=1, keepdims=True)   # (1, 1) XLU reduce


@partial(jax.jit, static_argnames=())
def _uncertainty_impl(sigma, task_losses):
    t = sigma.shape[0]
    sigma2d = sigma.astype(jnp.float32).reshape(1, t)
    losses2d = task_losses.astype(jnp.float32).reshape(1, t)

    weight, total = pl.pallas_call(
        _uncertainty_kernel,
        out_shape=(
            jax.ShapeDtypeStruct((1, t), jnp.float32),   # weightage per task
            jax.ShapeDtypeStruct((1, 1), jnp.float32),   # total loss
        ),
        in_specs=[
            pl.BlockSpec(memory_space=pltpu.MemorySpace.VMEM),
            pl.BlockSpec(memory_space=pltpu.MemorySpace.VMEM),
        ],
        out_specs=(
            pl.BlockSpec(memory_space=pltpu.MemorySpace.VMEM),
            pl.BlockSpec(memory_space=pltpu.MemorySpace.VMEM),
        ),
        cost_estimate=pl.CostEstimate(
            flops=6 * t, transcendentals=2 * t, bytes_accessed=16 * t + 4),
    )(sigma2d, losses2d)
    return total[0, 0], weight[0, :]


@jax.custom_vjp
def uncertainty_loss(sigma, task_losses):
    """sigma: (T,) f32, task_losses: (T,) f32 -> (total scalar, weightage (T,))."""
    return _uncertainty_impl(sigma, task_losses)


def _uncertainty_fwd(sigma, task_losses):
    out = _uncertainty_impl(sigma, task_losses)
    return out, (sigma.astype(jnp.float32), task_losses.astype(jnp.float32))


def _uncertainty_bwd(res, cot):
    sigma, task_losses = res
    g_total, g_weight = cot                 # cotangents for (total, weightage)
    sig2 = sigma * sigma
    sig3 = sigma * sig2
    d_sigma = (g_total * (-task_losses / sig3 + 2.0 * sigma / (1.0 + sig2))
               + g_weight * (-1.0 / sig3))
    d_losses = g_total * (1.0 / (2.0 * sig2))
    return d_sigma, d_losses


uncertainty_loss.defvjp(_uncertainty_fwd, _uncertainty_bwd)


class UncertaintyLossJAX:
    """Mirror of the PyTorch UncertaintyLoss module (forward semantics)."""

    def __init__(self, tasks):
        self.tasks = tasks.split('_')
        # nn.Parameter(torch.ones(len(tasks)))
        self.sigma = jnp.ones((len(self.tasks),), jnp.float32)

    def forward(self, losses):
        task_losses = jnp.stack(
            [jnp.asarray(losses[f'{t}_loss'], jnp.float32) for t in self.tasks]
        )
        total, weight = uncertainty_loss(self.sigma, task_losses)
        # Single device->host transfer for logging; no per-element dynamic-slice HLOs.
        sigma_host = jax.device_get(self.sigma)
        weight_host = jax.device_get(weight)
        for idx, task in enumerate(self.tasks):
            losses[f'sigma/{task}'] = sigma_host[idx]
            losses[f'sigma/{task}_weightage'] = weight_host[idx]
        return total


def _reference_total(sigma, task_losses):
    sig2 = sigma * sigma
    return jnp.sum(task_losses / (2.0 * sig2) + jnp.log(1.0 + sig2))


if __name__ == "__main__":
    tasks_str = "semantic_depth_detection_motion"  # 4 tasks
    module = UncertaintyLossJAX(tasks_str)
    # Use a non-uniform sigma so a per-task indexing bug would be caught
    # (the module still *initializes* sigma to ones, as in PyTorch).
    module.sigma = jnp.array([1.0, 1.3, 0.7, 1.9], jnp.float32)

    key = jax.random.PRNGKey(0)
    keys = jax.random.split(key, len(module.tasks))
    losses = {
        f'{t}_loss': jnp.abs(jax.random.normal(k, (), jnp.float32))
        for t, k in zip(module.tasks, keys)
    }
    task_losses_vec = jnp.stack([losses[f'{t}_loss'] for t in module.tasks])

    total = module.forward(losses)
    total = jax.block_until_ready(total)

    # Forward checks against a pure-JAX reference.
    ref_total = _reference_total(module.sigma, task_losses_vec)
    assert jnp.allclose(total, ref_total, rtol=1e-5, atol=1e-5), (total, ref_total)
    for idx, t in enumerate(module.tasks):
        ref_w = 1.0 / (2.0 * module.sigma[idx] ** 2)
        got_w = losses[f'sigma/{t}_weightage']
        assert jnp.allclose(got_w, ref_w, rtol=1e-5, atol=1e-5), (t, got_w, ref_w)

    # Gradient check: custom VJP vs. autodiff of the pure-JAX reference.
    g_sig, g_tl = jax.grad(lambda s, l: uncertainty_loss(s, l)[0], argnums=(0, 1))(
        module.sigma, task_losses_vec)
    rg_sig, rg_tl = jax.grad(_reference_total, argnums=(0, 1))(
        module.sigma, task_losses_vec)
    assert jnp.allclose(g_sig, rg_sig, rtol=1e-5, atol=1e-5), (g_sig, rg_sig)
    assert jnp.allclose(g_tl, rg_tl, rtol=1e-5, atol=1e-5), (g_tl, rg_tl)

    print("KERNEL_OK")
</pallas_src>

<mosaic_0001>
module attributes {stable_mosaic.version = 11 : i64} {
  func.func @_uncertainty_kernel(%arg0: memref<1x4xf32, #tpu.memory_space<vmem>>, %arg1: memref<1x4xf32, #tpu.memory_space<vmem>>, %arg2: memref<1x4xf32, #tpu.memory_space<vmem>>, %arg3: memref<1x1xf32, #tpu.memory_space<vmem>>) attributes {dimension_semantics = [], scalar_prefetch = 0 : i64, scratch_operands = 0 : i64, tpu.core_type = #tpu.core_type<tc>} {
    %c0 = arith.constant 0 : index
    %c0_0 = arith.constant 0 : index
    %0 = vector.load %arg0[%c0, %c0_0] : memref<1x4xf32, #tpu.memory_space<vmem>>, vector<1x4xf32>
    %c0_1 = arith.constant 0 : index
    %c0_2 = arith.constant 0 : index
    %1 = vector.load %arg1[%c0_1, %c0_2] : memref<1x4xf32, #tpu.memory_space<vmem>>, vector<1x4xf32>
    %2 = arith.mulf %0, %0 : vector<1x4xf32>
    %cst = arith.constant 2.000000e+00 : f32
    %3 = vector.broadcast %cst : f32 to vector<1x4xf32>
    %4 = arith.mulf %3, %2 : vector<1x4xf32>
    %cst_3 = arith.constant 1.000000e+00 : f32
    %5 = vector.broadcast %cst_3 : f32 to vector<1x4xf32>
    %6 = arith.divf %5, %4 : vector<1x4xf32>
    %7 = arith.mulf %6, %1 : vector<1x4xf32>
    %8 = math.log1p %2 : vector<1x4xf32>
    %9 = arith.addf %7, %8 : vector<1x4xf32>
    %c0_4 = arith.constant 0 : index
    %c0_5 = arith.constant 0 : index
    %10 = vector.load %arg2[%c0_4, %c0_5] : memref<1x4xf32, #tpu.memory_space<vmem>>, vector<1x4xf32>
    tpu.vector_store %arg2[%c0_4, %c0_5], %6 {strides = array<i32>} : memref<1x4xf32, #tpu.memory_space<vmem>>, vector<1x4xf32>,
    %cst_6 = arith.constant dense<0.000000e+00> : vector<1xf32>
    %11 = vector.multi_reduction <add>, %9, %cst_6 [1] : vector<1x4xf32> to vector<1xf32>
    %12 = vector.shape_cast %11 : vector<1xf32> to vector<1x1xf32>
    %c0_7 = arith.constant 0 : index
    %c0_8 = arith.constant 0 : index
    %13 = vector.load %arg3[%c0_7, %c0_8] : memref<1x1xf32, #tpu.memory_space<vmem>>, vector<1x1xf32>
    tpu.vector_store %arg3[%c0_7, %c0_8], %12 {strides = array<i32>} : memref<1x1xf32, #tpu.memory_space<vmem>>, vector<1x1xf32>,
    return
  }
}

</mosaic_0001>

<llo_original>
// kernel: _uncertainty_impl.1
$region0: #{_uncertainty_impl.1}
  #allocation0 [shape = 'u32[]', space=smem, size = 0x4, offset = 0x4, fixed_abs, tag = 'smem constant byte address 0x4 - core index']
  #allocation1 [shape = 'u32[144,128]{1,0:T(1,128)}', space=vmem, size = 0x12000, scoped, tag = 'internal scratch']
  %s0 = inlined_call_operand.vmem [shape: f32[1,4], index: 0, kind: input, shape index: {}]
  %s1 = inlined_call_operand.vmem [shape: f32[1,4], index: 1, kind: input, shape index: {}]
  %s2 = inlined_call_operand.hbm [shape: f32[1,4], index: 2, kind: output, shape index: {0}]
  %s3 = inlined_call_operand.hbm [shape: f32[1,1], index: 3, kind: output, shape index: {1}]
  %4 = xla_tuple %s2, %s3
  %s5 = sld [smem:[#allocation0]]
  $region26: #{_uncertainty_impl.1} parent=0
    _
  %s7 = ssub.s32 1, %s5
  %s8 = scalar_select 0, %s7, %s5
  $region1: #{_uncertainty_impl.1} parent=0
    #allocation2 [shape = 'u8[512]{0}', space=vmem, size = 0x400, scoped, tag = 'output window, operand 0, single buffered']
    #allocation3 [shape = 's32[1]{0}', space=sflag, size = 0x4, scoped, tag = 'scoped memory for _uncertainty_impl.1']
    #allocation4 [shape = 'u8[512]{0}', space=vmem, size = 0x400, scoped, tag = 'output window, operand 1, single buffered']
    #allocation5 [shape = 's32[1]{0}', space=sflag, size = 0x4, scoped, tag = 'scoped memory for _uncertainty_impl.1']
    %9 = vsyncpa [#allocation3], 0
    %10 = vsyncpa [#allocation5], 0
    // Predicated region
    $region2: #{_uncertainty_impl.1} parent=1 // pred_check
      _
    $region3: #{_uncertainty_impl.1} parent=1 // pred_check_branch
      %12 = sbr.rel (0) target = $region5
    $region4: #{_uncertainty_impl.1} parent=1 // pred_region
      _
    $region5: #{_uncertainty_impl.1} parent=1 // pred_fallthru
      _
    // Predicated region
    $region6: #{_uncertainty_impl.1} parent=1 // pred_check
      _
    $region7: #{_uncertainty_impl.1} parent=1 // pred_check_branch
      %14 = sbr.rel (0) target = $region9
    $region8: #{_uncertainty_impl.1} parent=1 // pred_region
      _
    $region9: #{_uncertainty_impl.1} parent=1 // pred_fallthru
      _
    %v15 = vld [vmem:[%s0] sm:$0x1]
    %v16 = vld [vmem:[%s1] sm:$0x1]
    %v17 = vmul.f32 %v15, %v15
    %v18 = vmul.f32 %v17, 2.0
    %v19 = vrcp.pop %v18
    %v20 = vmul.f32 1.0, %v19
    %v21 = vmul.f32 %v20, %v16
    %v22 = vadd.f32 %v17, 1.0
    %v23 = vlog2.pop %v22
    %v24 = vmul.f32 %v23, 0.6931472
    %v25 = vmul.f32 -0.5, %v17
    %v26 = vadd.f32 %v25, 1.0
    %v27 = vmul.f32 %v26, %v17
    %v28 = vand.u32 2147483647, %v17
    %vm29 = vcmp.lt.f32.partialorder %v28, 0.0004427343
    %v30 = vsel %vm29, %v27, %v24
    %v31 = vadd.f32 %v21, %v30
    %vm32 = vcmask 24576
    %33 = vst.msk [vmem:[#allocation2] sm:$0x1] %vm32, %v20
    %v34 = vsel %vm32, %v31, 0.0
    %35 = vadd.xlane.f32.xlu0 %v34
    %v36 = vpop.xlane.xlu0 %35
    %vm37 = vcmask 0
    %38 = vst.msk [vmem:[#allocation4] sm:$0x1] %vm37, %v36
    // Predicated region
    $region10: #{_uncertainty_impl.1} parent=1 // pred_check
      _
    $region11: #{_uncertainty_impl.1} parent=1 // pred_check_branch
      %40 = sbr.rel (0) target = $region13
    $region12: #{_uncertainty_impl.1} parent=1 // pred_region
      %s42 = ssub.s32 16, 16
      %43 = vsyncadd [#allocation3], %s42
      %s45 = sshll.u32 [#allocation2], 4
      %s46 = int_to_ptr.vmem [resolvable:$true] %s45
      %48 = dma.vmem_to_hbm [thread:$0]  %s46, 16, %s2, [#allocation3]
    $region13: #{_uncertainty_impl.1} parent=1 // pred_fallthru
      _
    // Predicated region
    $region14: #{_uncertainty_impl.1} parent=1 // pred_check
      _
    $region15: #{_uncertainty_impl.1} parent=1 // pred_check_branch
      %50 = sbr.rel (0) target = $region17
    $region16: #{_uncertainty_impl.1} parent=1 // pred_region
      %s52 = ssub.s32 16, 16
      %53 = vsyncadd [#allocation5], %s52
      %s55 = sshll.u32 [#allocation4], 4
      %s56 = int_to_ptr.vmem [resolvable:$true] %s55
      %58 = dma.vmem_to_hbm [thread:$0]  %s56, 16, %s3, [#allocation5]
    $region17: #{_uncertainty_impl.1} parent=1 // pred_fallthru
      _
    // Predicated region
    $region18: #{_uncertainty_impl.1} parent=1 // pred_check
      _
    $region19: #{_uncertainty_impl.1} parent=1 // pred_check_branch
      %60 = sbr.rel (0) target = $region21
    $region20: #{_uncertainty_impl.1} parent=1 // pred_region
      %61 = dma.done [#allocation3], 16
    $region21: #{_uncertainty_impl.1} parent=1 // pred_fallthru
      _
    // Predicated region
    $region22: #{_uncertainty_impl.1} parent=1 // pred_check
      _
    $region23: #{_uncertainty_impl.1} parent=1 // pred_check_branch
      %63 = sbr.rel (0) target = $region25
    $region24: #{_uncertainty_impl.1} parent=1 // pred_region
      %64 = dma.done [#allocation5], 16
    $region25: #{_uncertainty_impl.1} parent=1 // pred_fallthru
      _
    %65 = vsyncpa [#allocation3], 1
    %66 = vsyncpa [#allocation5], 1

</llo_original>
